<compile_context>
chip_gen: v5e
topology: v5e:2x2
jax: 0.10.0
libtpu: 0.0.40
codegen_flags: <defaults>
</compile_context>

<pallas_src>
import functools

import jax
import jax.numpy as jnp
from jax import lax
from jax.experimental import pallas as pl
from jax.experimental.pallas import tpu as pltpu


def _round_down(x: int, m: int) -> int:
    return (x // m) * m


def _classifier_kernel(x_ref, w1_ref, b1_ref, w2_ref, b2_ref, o_ref):
    # x_ref : [TB, H]    pooler_output tile (native dtype; bf16 welcome)
    # w1_ref: [H, LH]    Linear-1 weight transposed to [in, out]
    # b1_ref: [1, LH]
    # w2_ref: [NLP, LH]  Linear-2 weight in PyTorch [out, in] layout, out padded to NLP=8 sublanes
    # b2_ref: [NLP, 1]
    # o_ref : [NLP, TB]  logits, transposed (lane dim = batch) -> lane-dense, tiny writeback

    # Linear(hidden_size -> 32): native-dtype operands, f32 MXU accumulation.
    h = jnp.dot(x_ref[...], w1_ref[...], preferred_element_type=jnp.float32)
    # Bias + ReLU in f32 (accumulator dtype).
    h = jnp.maximum(h + b1_ref[...].astype(jnp.float32), 0.0)

    # Dropout(p=0.1): identity at inference time.
    # TODO(synk): training-mode dropout not implemented.

    # Linear(32 -> n_label), transposed output: contract the 32-dim of both operands
    # (w2 @ h^T) so no explicit transpose of h is needed; h stays f32 for bit-parity.
    logits_t = lax.dot_general(
        w2_ref[...].astype(jnp.float32), h,
        dimension_numbers=(((1,), (1,)), ((), ())),
        preferred_element_type=jnp.float32)                     # [NLP, TB]
    o_ref[...] = (logits_t + b2_ref[...].astype(jnp.float32)).astype(o_ref.dtype)


@functools.partial(jax.jit, static_argnames=("block_batch",))
def custom_classifier_head(pooler_output, w1, b1, w2, b2, *, block_batch: int | None = None):
    """Classifier head on top of BERT pooler_output.

    pooler_output: [B, H] (f32 or bf16 -- keep native dtype, do not upcast)
    w1: [32, H], b1: [32], w2: [n_label, 32], b2: [n_label]  (PyTorch nn.Linear layout)
    Returns logits [B, n_label] in f32.
    """
    B, H = pooler_output.shape
    LH = w1.shape[0]            # linear_layer_hidden_size = 32
    n_label = w2.shape[0]
    NLP = 8                     # n_label padded to one sublane group

    x = pooler_output
    x_itemsize = jnp.dtype(x.dtype).itemsize

    # --- Batch tile selection (HBM-streaming bound; bigger tiles amortize ~0.35us/step) ---
    if block_batch is None:
        block_batch = 2048 if x_itemsize <= 2 else 1024
    if B < 256:
        TB = B                                           # single full-array block
    else:
        # TB multiple of 128 (lane-dense transposed output), and >= 2 grid steps so
        # v7x's two TensorCores both get work.
        TB = min(block_batch, max(128, _round_down(B // 2, 128)))
    num_steps = int(pl.cdiv(B, TB))
    B_round = num_steps * TB          # output is lane-padded; input stays un-padded (ragged last block)
    grid = (num_steps,)

    # --- Parameter glue (fused / constant-folded under jit) ---
    w1_t = jnp.swapaxes(w1, 0, 1)                                          # [H, LH]
    b1_r = b1.reshape(1, LH)                                               # [1, LH]
    w2_p = jnp.zeros((NLP, LH), dtype=w2.dtype).at[:n_label, :].set(w2)    # [NLP, LH]
    b2_p = jnp.zeros((NLP, 1), dtype=b2.dtype).at[:n_label, 0].set(b2)     # [NLP, 1]

    # --- BlockSpecs ---
    x_index_map = lambda i: (i, 0)
    x_nbuf = 2
    if num_steps >= 3:
        try:  # triple-buffer the streamed activations (compute per tile << tile DMA)
            x_spec = pl.BlockSpec((TB, H), x_index_map, pipeline_mode=pl.Buffered(3))
            x_nbuf = 3
        except (TypeError, AttributeError):
            x_spec = pl.BlockSpec((TB, H), x_index_map)
    else:
        x_spec = pl.BlockSpec((TB, H), x_index_map)

    resident = lambda shape: pl.BlockSpec(shape, lambda i: (0, 0))

    # --- VMEM budget & cost estimate ---
    w_bytes = ((H * LH + LH) * jnp.dtype(w1.dtype).itemsize
               + (NLP * LH + NLP) * jnp.dtype(w2.dtype).itemsize)
    vmem_need = (x_nbuf * TB * H * x_itemsize        # streamed x buffers
                 + 2 * NLP * TB * 4                  # transposed f32 logits out (double-buffered)
                 + 2 * w_bytes)                      # resident params (conservative x2)
    vmem_limit = int(min(48 << 20, max(32 << 20, int(1.5 * vmem_need) + (1 << 20))))

    cost = pl.CostEstimate(
        flops=2 * B * H * LH + 2 * B * LH * NLP,
        transcendentals=0,
        bytes_accessed=B * H * x_itemsize + NLP * B_round * 4 + w_bytes)

    out_t = pl.pallas_call(
        _classifier_kernel,
        out_shape=jax.ShapeDtypeStruct((NLP, B_round), jnp.float32),
        grid_spec=pltpu.PrefetchScalarGridSpec(
            num_scalar_prefetch=0,
            grid=grid,
            in_specs=[
                x_spec,                    # x: streamed, multi-buffered
                resident((H, LH)),         # w1_t: resident
                resident((1, LH)),         # b1
                resident((NLP, LH)),       # w2 (sublane-padded)
                resident((NLP, 1)),        # b2
            ],
            out_specs=pl.BlockSpec((NLP, TB), lambda i: (0, i)),
        ),
        compiler_params=pltpu.CompilerParams(
            dimension_semantics=("parallel",),
            vmem_limit_bytes=vmem_limit),
        cost_estimate=cost,
    )(x, w1_t, b1_r, w2_p, b2_p)

    # [NLP, B_round] -> [B, n_label]; padded label rows and ragged-tail batch lanes discarded.
    return out_t[:n_label, :B].T


def _reference_head(x, w1, b1, w2, b2):
    return jnp.maximum(x @ w1.T + b1, 0.0) @ w2.T + b2


if __name__ == "__main__":
    # Small deterministic shapes consistent with the module:
    #   hidden_size=128 (stand-in for BERT hidden), linear_layer_hidden_size=32, n_label=2
    H, LH, N_LABEL = 128, 32, 2
    key = jax.random.PRNGKey(0)
    k_x, k_w1, k_b1, k_w2, k_b2, k_x2 = jax.random.split(key, 6)

    # PyTorch nn.Linear layout ([out, in]) parameters.
    w1 = jax.random.normal(k_w1, (LH, H), dtype=jnp.float32) * 0.02
    b1 = jax.random.normal(k_b1, (LH,), dtype=jnp.float32) * 0.02
    w2 = jax.random.normal(k_w2, (N_LABEL, LH), dtype=jnp.float32) * 0.02
    b2 = jax.random.normal(k_b2, (N_LABEL,), dtype=jnp.float32) * 0.02

    # --- Test 1: small batch, f32 (single full-array block path) ---
    B1 = 8
    x1 = jax.random.normal(k_x, (B1, H), dtype=jnp.float32)
    out1 = custom_classifier_head(x1, w1, b1, w2, b2)
    jax.block_until_ready(out1)
    ref1 = _reference_head(x1, w1, b1, w2, b2)
    assert out1.shape == (B1, N_LABEL)
    assert jnp.allclose(out1, ref1, atol=2e-5, rtol=2e-5)

    # --- Test 2: ragged multi-step grid path (B=300 -> TB=128, 3 steps, triple-buffered) ---
    B2 = 300
    x2 = jax.random.normal(k_x2, (B2, H), dtype=jnp.float32)
    out2 = custom_classifier_head(x2, w1, b1, w2, b2)
    jax.block_until_ready(out2)
    ref2 = _reference_head(x2, w1, b1, w2, b2)
    assert out2.shape == (B2, N_LABEL)
    assert jnp.allclose(out2, ref2, atol=2e-5, rtol=2e-5)

    # --- Test 3: bf16 activations + weights end-to-end (native dtype to the MXU, f32 accumulation) ---
    x3 = x1.astype(jnp.bfloat16)
    w1b, b1b = w1.astype(jnp.bfloat16), b1.astype(jnp.bfloat16)
    w2b, b2b = w2.astype(jnp.bfloat16), b2.astype(jnp.bfloat16)
    out3 = custom_classifier_head(x3, w1b, b1b, w2b, b2b)
    jax.block_until_ready(out3)
    ref3 = _reference_head(x3.astype(jnp.float32), w1b.astype(jnp.float32),
                           b1b.astype(jnp.float32), w2b.astype(jnp.float32),
                           b2b.astype(jnp.float32))
    assert out3.shape == (B1, N_LABEL)
    assert jnp.allclose(out3, ref3, atol=1e-2, rtol=1e-2)

    print("KERNEL_OK")
</pallas_src>

<mosaic_0001>
module attributes {stable_mosaic.version = 11 : i64} {
  func.func @_classifier_kernel(%arg0: i32, %arg1: memref<8x128xf32, #tpu.memory_space<vmem>>, %arg2: memref<128x32xf32, #tpu.memory_space<vmem>>, %arg3: memref<1x32xf32, #tpu.memory_space<vmem>>, %arg4: memref<8x32xf32, #tpu.memory_space<vmem>>, %arg5: memref<8x1xf32, #tpu.memory_space<vmem>>, %arg6: memref<8x8xf32, #tpu.memory_space<vmem>>) attributes {dimension_semantics = [#tpu.dimension_semantics<parallel>], iteration_bounds = array<i64: 1>, scalar_prefetch = 0 : i64, scratch_operands = 0 : i64, tpu.core_type = #tpu.core_type<tc>, window_params = [{transform_indices = @transform_0, window_bounds = array<i64: 8, 128>}, {pipeline_mode = #tpu.pipeline_mode<synchronous>, transform_indices = @transform_1, window_bounds = array<i64: 128, 32>}, {pipeline_mode = #tpu.pipeline_mode<synchronous>, transform_indices = @transform_2, window_bounds = array<i64: 1, 32>}, {pipeline_mode = #tpu.pipeline_mode<synchronous>, transform_indices = @transform_3, window_bounds = array<i64: 8, 32>}, {pipeline_mode = #tpu.pipeline_mode<synchronous>, transform_indices = @transform_4, window_bounds = array<i64: 8, 1>}, {transform_indices = @transform_5, window_bounds = array<i64: 8, 8>}]} {
    %c0 = arith.constant 0 : index
    %c0_0 = arith.constant 0 : index
    %0 = vector.load %arg1[%c0, %c0_0] : memref<8x128xf32, #tpu.memory_space<vmem>>, vector<8x128xf32>
    %c0_1 = arith.constant 0 : index
    %c0_2 = arith.constant 0 : index
    %1 = vector.load %arg2[%c0_1, %c0_2] : memref<128x32xf32, #tpu.memory_space<vmem>>, vector<128x32xf32>
    %cst = arith.constant dense<0.000000e+00> : vector<8x32xf32>
    %2 = tpu.matmul %0, %1, %cst {dimension_numbers = #tpu.dot_dimension_numbers<[1], [0], [0], [1], [0, 0, 1, 1], [], []>} : vector<8x128xf32>, vector<128x32xf32>, vector<8x32xf32> -> vector<8x32xf32>
    %c0_3 = arith.constant 0 : index
    %c0_4 = arith.constant 0 : index
    %3 = vector.load %arg3[%c0_3, %c0_4] : memref<1x32xf32, #tpu.memory_space<vmem>>, vector<1x32xf32>
    %4 = vector.broadcast %3 : vector<1x32xf32> to vector<8x32xf32>
    %5 = arith.addf %2, %4 : vector<8x32xf32>
    %cst_5 = arith.constant 0.000000e+00 : f32
    %6 = vector.broadcast %cst_5 : f32 to vector<8x32xf32>
    %7 = arith.maximumf %5, %6 : vector<8x32xf32>
    %c0_6 = arith.constant 0 : index
    %c0_7 = arith.constant 0 : index
    %8 = vector.load %arg4[%c0_6, %c0_7] : memref<8x32xf32, #tpu.memory_space<vmem>>, vector<8x32xf32>
    %cst_8 = arith.constant dense<0.000000e+00> : vector<8x8xf32>
    %9 = tpu.matmul %8, %7, %cst_8 {dimension_numbers = #tpu.dot_dimension_numbers<[1], [1], [0], [0], [0, 0, 1, 0], [], []>} : vector<8x32xf32>, vector<8x32xf32>, vector<8x8xf32> -> vector<8x8xf32>
    %c0_9 = arith.constant 0 : index
    %c0_10 = arith.constant 0 : index
    %10 = vector.load %arg5[%c0_9, %c0_10] : memref<8x1xf32, #tpu.memory_space<vmem>>, vector<8x1xf32>
    %11 = vector.broadcast %10 : vector<8x1xf32> to vector<8x8xf32>
    %12 = arith.addf %9, %11 : vector<8x8xf32>
    %c0_11 = arith.constant 0 : index
    %c0_12 = arith.constant 0 : index
    %13 = vector.load %arg6[%c0_11, %c0_12] : memref<8x8xf32, #tpu.memory_space<vmem>>, vector<8x8xf32>
    tpu.vector_store %arg6[%c0_11, %c0_12], %12 {strides = array<i32>} : memref<8x8xf32, #tpu.memory_space<vmem>>, vector<8x8xf32>,
    return
  }
  func.func @transform_0(%arg0: i32) -> (i32, i32) {
    %c0_i32 = arith.constant 0 : i32
    %c0_i32_0 = arith.constant 0 : i32
    return %arg0, %c0_i32 : i32, i32
  }
  func.func @transform_1(%arg0: i32) -> (i32, i32) {
    %c0_i32 = arith.constant 0 : i32
    %c0_i32_0 = arith.constant 0 : i32
    %c0_i32_1 = arith.constant 0 : i32
    return %c0_i32, %c0_i32_0 : i32, i32
  }
  func.func @transform_2(%arg0: i32) -> (i32, i32) {
    %c0_i32 = arith.constant 0 : i32
    %c0_i32_0 = arith.constant 0 : i32
    %c0_i32_1 = arith.constant 0 : i32
    return %c0_i32, %c0_i32_0 : i32, i32
  }
  func.func @transform_3(%arg0: i32) -> (i32, i32) {
    %c0_i32 = arith.constant 0 : i32
    %c0_i32_0 = arith.constant 0 : i32
    %c0_i32_1 = arith.constant 0 : i32
    return %c0_i32, %c0_i32_0 : i32, i32
  }
  func.func @transform_4(%arg0: i32) -> (i32, i32) {
    %c0_i32 = arith.constant 0 : i32
    %c0_i32_0 = arith.constant 0 : i32
    %c0_i32_1 = arith.constant 0 : i32
    return %c0_i32, %c0_i32_0 : i32, i32
  }
  func.func @transform_5(%arg0: i32) -> (i32, i32) {
    %c0_i32 = arith.constant 0 : i32
    %c0_i32_0 = arith.constant 0 : i32
    return %c0_i32, %arg0 : i32, i32
  }
}

</mosaic_0001>

<llo_original>
// kernel: custom_classifier_head.1
$region0: #{custom_classifier_head.1}
  #allocation0 [shape = 'u32[]', space=smem, size = 0x4, offset = 0x4, fixed_abs, tag = 'smem constant byte address 0x4 - core index']
  #allocation1 [shape = 'u32[72,128]{1,0:T(1,128)}', space=vmem, size = 0x9000, scoped, tag = 'internal scratch']
  %s0 = inlined_call_operand.vmem [shape: f32[8,128], index: 0, kind: input, shape index: {}]
  %s1 = inlined_call_operand.vmem [shape: f32[128,32], index: 1, kind: input, shape index: {}]
  %s2 = inlined_call_operand.vmem [shape: f32[1,32], index: 2, kind: input, shape index: {}]
  %s3 = inlined_call_operand.vmem [shape: f32[8,32], index: 3, kind: input, shape index: {}]
  %s4 = inlined_call_operand.vmem [shape: f32[8,1], index: 4, kind: input, shape index: {}]
  %s5 = inlined_call_operand.vmem [shape: f32[8,8], index: 5, kind: output, shape index: {}]
  %s6 = sld [smem:[#allocation0]]
  $region30: #{custom_classifier_head.1} parent=0
    _
  %s8 = ssub.s32 1, %s6
  %s9 = scalar_select 0, %s8, %s6
  // Predicated region
  $region2: #{custom_classifier_head.1} parent=0 // pred_check
    _
  $region3: #{custom_classifier_head.1} parent=0 // pred_check_branch
    %11 = sbr.rel (0) target = $region5
  $region4: #{custom_classifier_head.1} parent=0 // pred_region
    _
  $region5: #{custom_classifier_head.1} parent=0 // pred_fallthru
    _
  // Predicated region
  $region6: #{custom_classifier_head.1} parent=0 // pred_check
    _
  $region7: #{custom_classifier_head.1} parent=0 // pred_check_branch
    %13 = sbr.rel (0) target = $region9
  $region8: #{custom_classifier_head.1} parent=0 // pred_region
    _
  $region9: #{custom_classifier_head.1} parent=0 // pred_fallthru
    _
  // Predicated region
  $region10: #{custom_classifier_head.1} parent=0 // pred_check
    _
  $region11: #{custom_classifier_head.1} parent=0 // pred_check_branch
    %15 = sbr.rel (0) target = $region13
  $region12: #{custom_classifier_head.1} parent=0 // pred_region
    _
  $region13: #{custom_classifier_head.1} parent=0 // pred_fallthru
    _
  // Predicated region
  $region14: #{custom_classifier_head.1} parent=0 // pred_check
    _
  $region15: #{custom_classifier_head.1} parent=0 // pred_check_branch
    %17 = sbr.rel (0) target = $region17
  $region16: #{custom_classifier_head.1} parent=0 // pred_region
    _
  $region17: #{custom_classifier_head.1} parent=0 // pred_fallthru
    _
  // Predicated region
  $region18: #{custom_classifier_head.1} parent=0 // pred_check
    _
  $region19: #{custom_classifier_head.1} parent=0 // pred_check_branch
    %19 = sbr.rel (0) target = $region21
  $region20: #{custom_classifier_head.1} parent=0 // pred_region
    _
  $region21: #{custom_classifier_head.1} parent=0 // pred_fallthru
    _
  %v20 = vld [vmem:[%s0] sm:$0xff]
  %v21 = vld [vmem:[%s1] sm:$0xff]
  %v22 = vld [vmem:[%s1 + $0x8] sm:$0xff]
  %v23 = vld [vmem:[%s1 + $0x10] sm:$0xff]
  %v24 = vld [vmem:[%s1 + $0x18] sm:$0xff]
  %v25 = vld [vmem:[%s1 + $0x20] sm:$0xff]
  %v26 = vld [vmem:[%s1 + $0x28] sm:$0xff]
  %v27 = vld [vmem:[%s1 + $0x30] sm:$0xff]
  %v28 = vld [vmem:[%s1 + $0x38] sm:$0xff]
  %v29 = vld [vmem:[%s1 + $0x40] sm:$0xff]
  %v30 = vld [vmem:[%s1 + $0x48] sm:$0xff]
  %v31 = vld [vmem:[%s1 + $0x50] sm:$0xff]
  %v32 = vld [vmem:[%s1 + $0x58] sm:$0xff]
  %v33 = vld [vmem:[%s1 + $0x60] sm:$0xff]
  %v34 = vld [vmem:[%s1 + $0x68] sm:$0xff]
  %v35 = vld [vmem:[%s1 + $0x70] sm:$0xff]
  %v36 = vld [vmem:[%s1 + $0x78] sm:$0xff]
  %v37 = vld [vmem:[%s2] sm:$0x1]
  %v39 = vperm.slane %v37, 0
  %41 = vmatpush.msra.mxu0 %v36
  %42 = vmatpush.msra.mxu0 %v35
  %43 = vmatpush.msra.mxu0 %v34
  %44 = vmatpush.msra.mxu0 %v33
  %45 = vmatpush.msra.mxu0 %v32
  %46 = vmatpush.msra.mxu0 %v31
  %47 = vmatpush.msra.mxu0 %v30
  %48 = vmatpush.msra.mxu0 %v29
  %49 = vmatpush.msra.mxu0 %v28
  %50 = vmatpush.msra.mxu0 %v27
  %51 = vmatpush.msra.mxu0 %v26
  %52 = vmatpush.msra.mxu0 %v25
  %53 = vmatpush.msra.mxu0 %v24
  %54 = vmatpush.msra.mxu0 %v23
  %55 = vmatpush.msra.mxu0 %v22
  %56 = vmatpush.msra.mxu0 %v21
  %57 = vmatmul.f32.gmra.mxu0 %v20
  %v58 = vpop.f32.mrf.mxu0
  %v59 = vadd.f32 %v39, %v58
  %60 = vdwg.mxu0
  %v61 = vmax.f32 %v59, 0.0
  %v62 = vld [vmem:[%s3] sm:$0xff]
  %v63 = vld [vmem:[%s4] sm:$0xff]
  %65 = vset.pattern.permute.xlu0 0
  %66 = vperm.xlu0 %65, %v63
  %v67 = vpop.permute.xlu0 %66
  %vm69 = vcmask 261120
  %v71 = vsel %vm69, %v62, 0
  %v74 = vsel %vm69, %v61, 0
  %76 = vmatpush.xpose.msra.mxu0 0.0
  %77 = vmatpush.xpose.msra.mxu0 0.0
  %78 = vmatpush.xpose.msra.mxu0 0.0
  %79 = vmatpush.xpose.msra.mxu0 0.0
  %80 = vmatpush.xpose.msra.mxu0 0.0
  %81 = vmatpush.xpose.msra.mxu0 0.0
  %82 = vmatpush.xpose.msra.mxu0 0.0
  %83 = vmatpush.xpose.msra.mxu0 0.0
  %84 = vmatpush.xpose.msra.mxu0 0.0
  %85 = vmatpush.xpose.msra.mxu0 0.0
  %86 = vmatpush.xpose.msra.mxu0 0.0
  %87 = vmatpush.xpose.msra.mxu0 0.0
  %88 = vmatpush.xpose.msra.mxu0 0.0
  %89 = vmatpush.xpose.msra.mxu0 0.0
  %90 = vmatpush.xpose.msra.mxu0 0.0
  %91 = vmatpush.xpose.msra.mxu0 %v74
  %92 = vmatmul.f32.gmra.mxu0 %v71
  %v93 = vpop.f32.mrf.mxu0
  %v94 = vadd.f32 %v67, %v93
  %95 = vdwg.mxu0
  %vm96 = vcmask 64512
  %97 = vst.msk [vmem:[%s5] sm:$0xff] %vm96, %v94
  // Predicated region
  $region22: #{custom_classifier_head.1} parent=0 // pred_check
    _
  $region23: #{custom_classifier_head.1} parent=0 // pred_check_branch
    %99 = sbr.rel (0) target = $region25
  $region24: #{custom_classifier_head.1} parent=0 // pred_region
    _
  $region25: #{custom_classifier_head.1} parent=0 // pred_fallthru
    _
  // Predicated region
  $region26: #{custom_classifier_head.1} parent=0 // pred_check
    _
  $region27: #{custom_classifier_head.1} parent=0 // pred_check_branch
    %101 = sbr.rel (0) target = $region29
  $region28: #{custom_classifier_head.1} parent=0 // pred_region
    _
  $region29: #{custom_classifier_head.1} parent=0 // pred_fallthru
    _

</llo_original>
